<compile_context>
chip_gen: v5e
topology: v5e:2x2
jax: 0.10.0
libtpu: 0.0.40
codegen_flags: <defaults>
</compile_context>

<pallas_src>
import functools

import jax
import jax.numpy as jnp
from jax.experimental import pallas as pl
from jax.experimental.pallas import tpu as pltpu


LANE = 128          # last-dim (lane) tiling unit
SUBLANE = 8         # second-to-last-dim (sublane) tiling unit
MAX_TILE_B = 1024   # per-grid-step batch tile cap (review: 512-1024 >> 256)
MEGACORE_MIN_BATCH = 512            # ensure >=2 grid steps above this (v7x: 2 TCs)
RESIDENT_SINGLE_BUFFER_BYTES = 8 << 20  # single-buffer resident weights above this
# Latency-critical tiny batches (SAC action selection) can skip Pallas entirely by
# raising this to ~32; kept at 0 so the Pallas path is always exercised here.
SMALL_BATCH_XLA_MAX = 0


def _round_up(n, m):
    return ((n + m - 1) // m) * m


# ---------------------------------------------------------------------------
# Fused MLP kernel: chained (x @ W_t + b) with ReLU on all but the last layer.
# refs = (x_ref, w0_ref, b0_ref, w1_ref, b1_ref, ..., o_ref)
# Intermediates live in VMEM/vregs for the whole chain (no HBM round-trips).
# ---------------------------------------------------------------------------
def _mlp_kernel(*refs, num_layers: int):
    x_ref = refs[0]
    o_ref = refs[-1]
    param_refs = refs[1:-1]

    h = x_ref[...]                                     # (TILE_B, Din) f32
    for i in range(num_layers):
        w = param_refs[2 * i][...]                     # (Din_i, Dout_pad_i)
        b = param_refs[2 * i + 1][...]                 # (1, Dout_pad_i) f32
        h = jnp.dot(h.astype(w.dtype), w,
                    preferred_element_type=jnp.float32) + b
        if i < num_layers - 1:
            h = jnp.maximum(h, 0.0)                    # ReLU (hidden layers only)
    # Store only the real output columns; zero-padded columns never hit HBM.
    o_ref[...] = h[:, : o_ref.shape[-1]].astype(o_ref.dtype)


def _mlp_pallas(x, weights, biases, dout, tile_b):
    """x: (B_pad, Din) f32 with B_pad % tile_b == 0.  Returns (B_pad, dout) f32."""
    B_pad, din = x.shape
    num_layers = len(weights)

    # Weights/biases are resident across batch tiles (constant index maps).
    # Single-buffer them only if they are large enough that double-buffered
    # residency would threaten VMEM (v7x 64 MiB) — irrelevant at 128-wide layers.
    resident_bytes = sum(int(w.size) * w.dtype.itemsize for w in weights)
    resident_bytes += sum(int(b.size) * b.dtype.itemsize for b in biases)
    pmode = ({"pipeline_mode": pl.Buffered(1)}
             if resident_bytes > RESIDENT_SINGLE_BUFFER_BYTES else {})

    in_specs = [pl.BlockSpec((tile_b, din), lambda i: (i, 0))]
    flat_params = []
    for w, b in zip(weights, biases):
        in_specs.append(pl.BlockSpec(w.shape, lambda i: (0, 0), **pmode))
        in_specs.append(pl.BlockSpec(b.shape, lambda i: (0, 0), **pmode))
        flat_params += [w, b]

    kernel = functools.partial(_mlp_kernel, num_layers=num_layers)
    return pl.pallas_call(
        kernel,
        out_shape=jax.ShapeDtypeStruct((B_pad, dout), jnp.float32),
        grid_spec=pl.GridSpec(
            grid=(B_pad // tile_b,),
            in_specs=in_specs,
            out_specs=pl.BlockSpec((tile_b, dout), lambda i: (i, 0)),
        ),
        compiler_params=pltpu.CompilerParams(
            dimension_semantics=("parallel",),     # megacore-friendly batch axis
        ),
    )(x, *flat_params)


# ---------------------------------------------------------------------------
# Parameter construction (mirrors mlp() + weight_init() from the module):
# orthogonal weights, zero biases.  Weights are stored transposed (in, out),
# in bfloat16 by default, with:
#   * layer 0 contracting dim kept at the REAL input_dim (so x needs no
#     feature-dim padding at all),
#   * every layer's output dim zero-padded to a 128-lane multiple (inert).
# ---------------------------------------------------------------------------
def _orthogonal(key, out_dim, in_dim):
    """Orthogonal init a la nn.init.orthogonal_ for a weight of shape (out, in)."""
    rows, cols = out_dim, in_dim
    flat = jax.random.normal(key, (rows, cols), dtype=jnp.float32)
    if rows < cols:
        flat = flat.T
    q, r = jnp.linalg.qr(flat)
    d = jnp.sign(jnp.diag(r))
    d = jnp.where(d == 0, 1.0, d)       # guard against zero diagonal
    q = q * d[None, :]
    if rows < cols:
        q = q.T
    return q                            # (out_dim, in_dim)


def init_mlp_params(key, input_dim, hidden_dim, output_dim, hidden_depth,
                    weight_dtype=jnp.bfloat16):
    """Returns ((weights, biases), dims); weights[i]: (Din_i, Dout_pad_i) in
    weight_dtype, biases[i]: (1, Dout_pad_i) f32; dims are the true layer dims."""
    if hidden_depth == 0:
        dims = [(input_dim, output_dim)]
    else:
        dims = [(input_dim, hidden_dim)]
        dims += [(hidden_dim, hidden_dim)] * (hidden_depth - 1)
        dims += [(hidden_dim, output_dim)]

    weights, biases = [], []
    for li, (din, dout) in enumerate(dims):
        key, sub = jax.random.split(key)
        w = _orthogonal(sub, dout, din)                  # (out, in), PyTorch layout
        w_t = w.T                                        # (in, out): x @ W.T == x @ w_t
        in_p = din if li == 0 else _round_up(din, LANE)  # layer 0: real input_dim
        out_p = _round_up(dout, LANE)                    # lane-dense compute width
        w_pad = jnp.zeros((in_p, out_p), jnp.float32).at[:din, :dout].set(w_t)
        weights.append(w_pad.astype(weight_dtype))
        biases.append(jnp.zeros((1, out_p), jnp.float32))   # weight_init: bias = 0
    return (tuple(weights), tuple(biases)), tuple(dims)


# ---------------------------------------------------------------------------
# Forward: pad ONLY the batch axis (<= a few rows), run the single fused
# kernel, drop the padded rows.  (output_mod=None, matching the module default.)
# ---------------------------------------------------------------------------
@functools.partial(jax.jit, static_argnames=("dims",))
def mlp_forward(params, x, dims):
    weights, biases = params
    B, din = x.shape
    dout = dims[-1][1]
    x = x.astype(jnp.float32)

    # Optional plain-XLA path for tiny latency-bound batches (disabled by default).
    if B <= SMALL_BATCH_XLA_MAX:
        h = x
        for i, (w, b) in enumerate(zip(weights, biases)):
            h = h @ w.astype(jnp.float32) + b
            if i < len(weights) - 1:
                h = jnp.maximum(h, 0.0)
        return h[:, :dout]

    # Batch tiling: tiles up to MAX_TILE_B rows, at most ~1 sublane-row of zero
    # padding per tile, and >= 2 grid steps for big batches (both v7x TCs busy).
    B8 = _round_up(B, SUBLANE)
    n_tiles = max(1, pl.cdiv(B8, MAX_TILE_B))
    if B8 >= MEGACORE_MIN_BATCH:
        n_tiles = max(n_tiles, 2)
    tile_b = _round_up(pl.cdiv(B8, n_tiles), SUBLANE)
    B_pad = tile_b * n_tiles

    if B_pad != B:
        x = jnp.pad(x, ((0, B_pad - B), (0, 0)))     # batch axis only

    out = _mlp_pallas(x, weights, biases, dout, tile_b)
    return out[:B] if B_pad != B else out


# ---------------------------------------------------------------------------
if __name__ == "__main__":
    key = jax.random.PRNGKey(0)

    # Small shapes consistent with the module's forward: x is (batch, input_dim).
    batch = 2
    input_dim = 12
    hidden_dim = 32
    output_dim = 5
    hidden_depth = 2

    k_params, k_x = jax.random.split(key)
    params, dims = init_mlp_params(k_params, input_dim, hidden_dim, output_dim,
                                   hidden_depth)
    x = jax.random.normal(k_x, (batch, input_dim), dtype=jnp.float32)

    out = mlp_forward(params, x, dims)
    out = jax.block_until_ready(out)

    # Reference in plain JAX, replicating the kernel's bf16 activation casts so
    # only f32 accumulation order differs from the Pallas/MXU result.
    weights, biases = params
    ref = x
    for i, (w_pad, b_pad) in enumerate(zip(weights, biases)):
        ref = jnp.dot(ref.astype(w_pad.dtype).astype(jnp.float32),
                      w_pad.astype(jnp.float32)) + b_pad
        if i < len(weights) - 1:
            ref = jnp.maximum(ref, 0.0)
    ref = ref[:, :output_dim]

    assert out.shape == (batch, output_dim)
    assert jnp.allclose(out, ref, atol=1e-3, rtol=1e-3)

    print("KERNEL_OK")
</pallas_src>

<mosaic_0001>
module attributes {stable_mosaic.version = 11 : i64} {
  func.func @_mlp_kernel(%arg0: i32, %arg1: memref<8x12xf32, #tpu.memory_space<vmem>>, %arg2: memref<12x128xbf16, #tpu.memory_space<vmem>>, %arg3: memref<1x128xf32, #tpu.memory_space<vmem>>, %arg4: memref<128x128xbf16, #tpu.memory_space<vmem>>, %arg5: memref<1x128xf32, #tpu.memory_space<vmem>>, %arg6: memref<128x128xbf16, #tpu.memory_space<vmem>>, %arg7: memref<1x128xf32, #tpu.memory_space<vmem>>, %arg8: memref<8x5xf32, #tpu.memory_space<vmem>>) attributes {dimension_semantics = [#tpu.dimension_semantics<parallel>], iteration_bounds = array<i64: 1>, scalar_prefetch = 0 : i64, scratch_operands = 0 : i64, tpu.core_type = #tpu.core_type<tc>, window_params = [{transform_indices = @transform_0, window_bounds = array<i64: 8, 12>}, {pipeline_mode = #tpu.pipeline_mode<synchronous>, transform_indices = @transform_1, window_bounds = array<i64: 12, 128>}, {pipeline_mode = #tpu.pipeline_mode<synchronous>, transform_indices = @transform_2, window_bounds = array<i64: 1, 128>}, {pipeline_mode = #tpu.pipeline_mode<synchronous>, transform_indices = @transform_3, window_bounds = array<i64: 128, 128>}, {pipeline_mode = #tpu.pipeline_mode<synchronous>, transform_indices = @transform_4, window_bounds = array<i64: 1, 128>}, {pipeline_mode = #tpu.pipeline_mode<synchronous>, transform_indices = @transform_5, window_bounds = array<i64: 128, 128>}, {pipeline_mode = #tpu.pipeline_mode<synchronous>, transform_indices = @transform_6, window_bounds = array<i64: 1, 128>}, {transform_indices = @transform_7, window_bounds = array<i64: 8, 5>}]} {
    %c0 = arith.constant 0 : index
    %c0_0 = arith.constant 0 : index
    %0 = vector.load %arg1[%c0, %c0_0] : memref<8x12xf32, #tpu.memory_space<vmem>>, vector<8x12xf32>
    %c0_1 = arith.constant 0 : index
    %c0_2 = arith.constant 0 : index
    %1 = vector.load %arg2[%c0_1, %c0_2] : memref<12x128xbf16, #tpu.memory_space<vmem>>, vector<12x128xbf16>
    %c0_3 = arith.constant 0 : index
    %c0_4 = arith.constant 0 : index
    %2 = vector.load %arg3[%c0_3, %c0_4] : memref<1x128xf32, #tpu.memory_space<vmem>>, vector<1x128xf32>
    %3 = arith.truncf %0 : vector<8x12xf32> to vector<8x12xbf16>
    %cst = arith.constant dense<0.000000e+00> : vector<8x128xf32>
    %4 = tpu.matmul %3, %1, %cst {dimension_numbers = #tpu.dot_dimension_numbers<[1], [0], [0], [1], [0, 0, 1, 1], [], []>} : vector<8x12xbf16>, vector<12x128xbf16>, vector<8x128xf32> -> vector<8x128xf32>
    %5 = vector.broadcast %2 : vector<1x128xf32> to vector<8x128xf32>
    %6 = arith.addf %4, %5 : vector<8x128xf32>
    %cst_5 = arith.constant 0.000000e+00 : f32
    %7 = vector.broadcast %cst_5 : f32 to vector<8x128xf32>
    %8 = arith.maximumf %6, %7 : vector<8x128xf32>
    %c0_6 = arith.constant 0 : index
    %c0_7 = arith.constant 0 : index
    %9 = vector.load %arg4[%c0_6, %c0_7] : memref<128x128xbf16, #tpu.memory_space<vmem>>, vector<128x128xbf16>
    %c0_8 = arith.constant 0 : index
    %c0_9 = arith.constant 0 : index
    %10 = vector.load %arg5[%c0_8, %c0_9] : memref<1x128xf32, #tpu.memory_space<vmem>>, vector<1x128xf32>
    %11 = arith.truncf %8 : vector<8x128xf32> to vector<8x128xbf16>
    %cst_10 = arith.constant dense<0.000000e+00> : vector<8x128xf32>
    %12 = tpu.matmul %11, %9, %cst_10 {dimension_numbers = #tpu.dot_dimension_numbers<[1], [0], [0], [1], [0, 0, 1, 1], [], []>} : vector<8x128xbf16>, vector<128x128xbf16>, vector<8x128xf32> -> vector<8x128xf32>
    %13 = vector.broadcast %10 : vector<1x128xf32> to vector<8x128xf32>
    %14 = arith.addf %12, %13 : vector<8x128xf32>
    %cst_11 = arith.constant 0.000000e+00 : f32
    %15 = vector.broadcast %cst_11 : f32 to vector<8x128xf32>
    %16 = arith.maximumf %14, %15 : vector<8x128xf32>
    %c0_12 = arith.constant 0 : index
    %c0_13 = arith.constant 0 : index
    %17 = vector.load %arg6[%c0_12, %c0_13] : memref<128x128xbf16, #tpu.memory_space<vmem>>, vector<128x128xbf16>
    %c0_14 = arith.constant 0 : index
    %c0_15 = arith.constant 0 : index
    %18 = vector.load %arg7[%c0_14, %c0_15] : memref<1x128xf32, #tpu.memory_space<vmem>>, vector<1x128xf32>
    %19 = arith.truncf %16 : vector<8x128xf32> to vector<8x128xbf16>
    %cst_16 = arith.constant dense<0.000000e+00> : vector<8x128xf32>
    %20 = tpu.matmul %19, %17, %cst_16 {dimension_numbers = #tpu.dot_dimension_numbers<[1], [0], [0], [1], [0, 0, 1, 1], [], []>} : vector<8x128xbf16>, vector<128x128xbf16>, vector<8x128xf32> -> vector<8x128xf32>
    %21 = vector.broadcast %18 : vector<1x128xf32> to vector<8x128xf32>
    %22 = arith.addf %20, %21 : vector<8x128xf32>
    %23 = vector.extract_strided_slice %22 {offsets = [0, 0], sizes = [8, 5], strides = [1, 1]} : vector<8x128xf32> to vector<8x5xf32>
    %c0_17 = arith.constant 0 : index
    %c0_18 = arith.constant 0 : index
    %24 = vector.load %arg8[%c0_17, %c0_18] : memref<8x5xf32, #tpu.memory_space<vmem>>, vector<8x5xf32>
    tpu.vector_store %arg8[%c0_17, %c0_18], %23 {strides = array<i32>} : memref<8x5xf32, #tpu.memory_space<vmem>>, vector<8x5xf32>,
    return
  }
  func.func @transform_0(%arg0: i32) -> (i32, i32) {
    %c0_i32 = arith.constant 0 : i32
    %c0_i32_0 = arith.constant 0 : i32
    return %arg0, %c0_i32 : i32, i32
  }
  func.func @transform_1(%arg0: i32) -> (i32, i32) {
    %c0_i32 = arith.constant 0 : i32
    %c0_i32_0 = arith.constant 0 : i32
    %c0_i32_1 = arith.constant 0 : i32
    return %c0_i32, %c0_i32_0 : i32, i32
  }
  func.func @transform_2(%arg0: i32) -> (i32, i32) {
    %c0_i32 = arith.constant 0 : i32
    %c0_i32_0 = arith.constant 0 : i32
    %c0_i32_1 = arith.constant 0 : i32
    return %c0_i32, %c0_i32_0 : i32, i32
  }
  func.func @transform_3(%arg0: i32) -> (i32, i32) {
    %c0_i32 = arith.constant 0 : i32
    %c0_i32_0 = arith.constant 0 : i32
    %c0_i32_1 = arith.constant 0 : i32
    return %c0_i32, %c0_i32_0 : i32, i32
  }
  func.func @transform_4(%arg0: i32) -> (i32, i32) {
    %c0_i32 = arith.constant 0 : i32
    %c0_i32_0 = arith.constant 0 : i32
    %c0_i32_1 = arith.constant 0 : i32
    return %c0_i32, %c0_i32_0 : i32, i32
  }
  func.func @transform_5(%arg0: i32) -> (i32, i32) {
    %c0_i32 = arith.constant 0 : i32
    %c0_i32_0 = arith.constant 0 : i32
    %c0_i32_1 = arith.constant 0 : i32
    return %c0_i32, %c0_i32_0 : i32, i32
  }
  func.func @transform_6(%arg0: i32) -> (i32, i32) {
    %c0_i32 = arith.constant 0 : i32
    %c0_i32_0 = arith.constant 0 : i32
    %c0_i32_1 = arith.constant 0 : i32
    return %c0_i32, %c0_i32_0 : i32, i32
  }
  func.func @transform_7(%arg0: i32) -> (i32, i32) {
    %c0_i32 = arith.constant 0 : i32
    %c0_i32_0 = arith.constant 0 : i32
    return %arg0, %c0_i32 : i32, i32
  }
}

</mosaic_0001>

<llo_original>
// kernel: mlp_forward.1
$region0: #{mlp_forward.1}
  #allocation0 [shape = 'u32[]', space=smem, size = 0x4, offset = 0x4, fixed_abs, tag = 'smem constant byte address 0x4 - core index']
  #allocation1 [shape = 'u32[72,128]{1,0:T(1,128)}', space=vmem, size = 0x9000, scoped, tag = 'internal scratch']
  %s0 = inlined_call_operand.vmem [shape: f32[8,12], index: 0, kind: input, shape index: {}]
  %s1 = inlined_call_operand.vmem [shape: bf16[12,128], index: 1, kind: input, shape index: {}]
  %s2 = inlined_call_operand.vmem [shape: f32[1,128], index: 2, kind: input, shape index: {}]
  %s3 = inlined_call_operand.hbm [shape: bf16[128,128], index: 3, kind: input, shape index: {}]
  %s4 = inlined_call_operand.vmem [shape: f32[1,128], index: 4, kind: input, shape index: {}]
  %s5 = inlined_call_operand.hbm [shape: bf16[128,128], index: 5, kind: input, shape index: {}]
  %s6 = inlined_call_operand.vmem [shape: f32[1,128], index: 6, kind: input, shape index: {}]
  %s7 = inlined_call_operand.vmem [shape: f32[8,5], index: 7, kind: output, shape index: {}]
  %s8 = sld [smem:[#allocation0]]
  $region46: #{mlp_forward.1} parent=0
    _
  %s10 = ssub.s32 1, %s8
  %s11 = scalar_select 0, %s10, %s8
  $region1: #{mlp_forward.1} parent=0
    #allocation2 [shape = 'u8[32768]{0}', space=vmem, size = 0x8000, scoped, tag = 'input window, operand 3, single buffered']
    #allocation3 [shape = 's32[1]{0}', space=sflag, size = 0x4, scoped, tag = 'scoped memory for mlp_forward.1']
    #allocation4 [shape = 'u8[32768]{0}', space=vmem, size = 0x8000, scoped, tag = 'input window, operand 5, single buffered']
    #allocation5 [shape = 's32[1]{0}', space=sflag, size = 0x4, scoped, tag = 'scoped memory for mlp_forward.1']
    %12 = vsyncpa [#allocation3], 0
    %13 = vsyncpa [#allocation5], 0
    // Predicated region
    $region2: #{mlp_forward.1} parent=1 // pred_check
      _
    $region3: #{mlp_forward.1} parent=1 // pred_check_branch
      %15 = sbr.rel (0) target = $region5
    $region4: #{mlp_forward.1} parent=1 // pred_region
      _
    $region5: #{mlp_forward.1} parent=1 // pred_fallthru
      _
    // Predicated region
    $region6: #{mlp_forward.1} parent=1 // pred_check
      _
    $region7: #{mlp_forward.1} parent=1 // pred_check_branch
      %17 = sbr.rel (0) target = $region9
    $region8: #{mlp_forward.1} parent=1 // pred_region
      _
    $region9: #{mlp_forward.1} parent=1 // pred_fallthru
      _
    // Predicated region
    $region10: #{mlp_forward.1} parent=1 // pred_check
      _
    $region11: #{mlp_forward.1} parent=1 // pred_check_branch
      %19 = sbr.rel (0) target = $region13
    $region12: #{mlp_forward.1} parent=1 // pred_region
      _
    $region13: #{mlp_forward.1} parent=1 // pred_fallthru
      _
    // Predicated region
    $region14: #{mlp_forward.1} parent=1 // pred_check
      _
    $region15: #{mlp_forward.1} parent=1 // pred_check_branch
      %21 = sbr.rel (0) target = $region17
    $region16: #{mlp_forward.1} parent=1 // pred_region
      %23 = vsyncadd [#allocation3], 0
      %s24 = sshll.u32 %s3, 4
      %s25 = int_to_ptr.hbm [resolvable:$true] %s24
      %s26 = sshll.u32 [#allocation2], 4
      %s27 = int_to_ptr.vmem [resolvable:$true] %s26
      %32 = dma.hbm_to_vmem [thread:$0]  %s25, 1024, %s27, [#allocation3], 64, 64, 4
    $region17: #{mlp_forward.1} parent=1 // pred_fallthru
      _
    // Predicated region
    $region18: #{mlp_forward.1} parent=1 // pred_check
      _
    $region19: #{mlp_forward.1} parent=1 // pred_check_branch
      %34 = sbr.rel (0) target = $region21
    $region20: #{mlp_forward.1} parent=1 // pred_region
      _
    $region21: #{mlp_forward.1} parent=1 // pred_fallthru
      _
    // Predicated region
    $region22: #{mlp_forward.1} parent=1 // pred_check
      _
    $region23: #{mlp_forward.1} parent=1 // pred_check_branch
      %36 = sbr.rel (0) target = $region25
    $region24: #{mlp_forward.1} parent=1 // pred_region
      %38 = vsyncadd [#allocation5], 0
      %s39 = sshll.u32 %s5, 4
      %s40 = int_to_ptr.hbm [resolvable:$true] %s39
      %s41 = sshll.u32 [#allocation4], 4
      %s42 = int_to_ptr.vmem [resolvable:$true] %s41
      %47 = dma.hbm_to_vmem [thread:$0]  %s40, 1024, %s42, [#allocation5], 64, 64, 4
    $region25: #{mlp_forward.1} parent=1 // pred_fallthru
      _
    // Predicated region
    $region26: #{mlp_forward.1} parent=1 // pred_check
      _
    $region27: #{mlp_forward.1} parent=1 // pred_check_branch
      %49 = sbr.rel (0) target = $region29
    $region28: #{mlp_forward.1} parent=1 // pred_region
      _
    $region29: #{mlp_forward.1} parent=1 // pred_fallthru
      _
    // Predicated region
    $region30: #{mlp_forward.1} parent=1 // pred_check
      _
    $region31: #{mlp_forward.1} parent=1 // pred_check_branch
      %51 = sbr.rel (0) target = $region33
    $region32: #{mlp_forward.1} parent=1 // pred_region
      %53 = dma.done [#allocation3], 1024
    $region33: #{mlp_forward.1} parent=1 // pred_fallthru
      _
    // Predicated region
    $region34: #{mlp_forward.1} parent=1 // pred_check
      _
    $region35: #{mlp_forward.1} parent=1 // pred_check_branch
      %55 = sbr.rel (0) target = $region37
    $region36: #{mlp_forward.1} parent=1 // pred_region
      %57 = dma.done [#allocation5], 1024
    $region37: #{mlp_forward.1} parent=1 // pred_fallthru
      _
    %v59 = vld [vmem:[%s0] sm:$0xff]
    %v60 = vld [vmem:[%s1] sm:$0xf]
    %v61 = vld [vmem:[%s1 + $0x4] sm:$0x3]
    %v62 = vld [vmem:[%s2] sm:$0x1]
    %v63 = vpack.c.bf16 %v59, %v59
    %v65 = vperm.slane %v62, 0
    %v69 = vunpack.c.l.b16 %v60
    %v70 = vunpack.c.l.b16 %v61
    %v71 = vpack.c.b16 %v70, %v69
    %vm72 = vcmask 97280
    %v74 = vsel %vm72, %v63, 0
    %vm76 = vcmask 1045504
    %v78 = vsel %vm76, %v71, 0
    %80 = vmatpush.bf16.msra.mxu0 0
    %81 = vmatpush.bf16.msra.mxu0 0
    %82 = vmatpush.bf16.msra.mxu0 0
    %83 = vmatpush.bf16.msra.mxu0 0
    %84 = vmatpush.bf16.msra.mxu0 0
    %85 = vmatpush.bf16.msra.mxu0 0
    %86 = vmatpush.bf16.msra.mxu0 0
    %87 = vmatpush.bf16.msra.mxu0 %v78
    %88 = vmatmul.bf16.gmra.mxu0 %v74
    %v89 = vpop.f32.mrf.mxu0
    %v90 = vadd.f32 %v65, %v89
    %v91 = vpop.f32.mrf.mxu0
    %92 = vdwg.mxu0
    %v93 = vmax.f32 %v90, 0.0
    %v94 = vld [vmem:[#allocation2] sm:$0xf]
    %v95 = vld [vmem:[#allocation2 + $0x4] sm:$0xf]
    %v96 = vld [vmem:[#allocation2 + $0x8] sm:$0xf]
    %v97 = vld [vmem:[#allocation2 + $0xc] sm:$0xf]
    %v98 = vld [vmem:[#allocation2 + $0x10] sm:$0xf]
    %v99 = vld [vmem:[#allocation2 + $0x14] sm:$0xf]
    %v100 = vld [vmem:[#allocation2 + $0x18] sm:$0xf]
    %v101 = vld [vmem:[#allocation2 + $0x1c] sm:$0xf]
    %v102 = vld [vmem:[#allocation2 + $0x20] sm:$0xf]
    %v103 = vld [vmem:[#allocation2 + $0x24] sm:$0xf]
    %v104 = vld [vmem:[#allocation2 + $0x28] sm:$0xf]
    %v105 = vld [vmem:[#allocation2 + $0x2c] sm:$0xf]
    %v106 = vld [vmem:[#allocation2 + $0x30] sm:$0xf]
    %v107 = vld [vmem:[#allocation2 + $0x34] sm:$0xf]
    %v108 = vld [vmem:[#allocation2 + $0x38] sm:$0xf]
    %v109 = vld [vmem:[#allocation2 + $0x3c] sm:$0xf]
    %v110 = vld [vmem:[%s4] sm:$0x1]
    %v111 = vpack.c.bf16 %v93, %v93
    %v113 = vperm.slane %v110, 0
    %v131 = vunpack.c.l.b16 %v94
    %v132 = vunpack.c.l.b16 %v95
    %v133 = vunpack.c.l.b16 %v96
    %v134 = vunpack.c.l.b16 %v97
    %v135 = vunpack.c.l.b16 %v98
    %v136 = vunpack.c.l.b16 %v99
    %v137 = vunpack.c.l.b16 %v100
    %v138 = vunpack.c.l.b16 %v101
    %v139 = vunpack.c.l.b16 %v102
    %v140 = vunpack.c.l.b16 %v103
    %v141 = vunpack.c.l.b16 %v104
    %v142 = vunpack.c.l.b16 %v105
    %v143 = vunpack.c.l.b16 %v106
    %v144 = vunpack.c.l.b16 %v107
    %v145 = vunpack.c.l.b16 %v108
    %v146 = vunpack.c.l.b16 %v109
    %v147 = vpack.c.b16 %v132, %v131
    %v148 = vpack.c.b16 %v134, %v133
    %v149 = vpack.c.b16 %v136, %v135
    %v150 = vpack.c.b16 %v138, %v137
    %v151 = vpack.c.b16 %v140, %v139
    %v152 = vpack.c.b16 %v142, %v141
    %v153 = vpack.c.b16 %v144, %v143
    %v154 = vpack.c.b16 %v146, %v145
    %163 = vmatpush.bf16.msra.mxu0 %v154
    %164 = vmatpush.bf16.msra.mxu0 %v153
    %165 = vmatpush.bf16.msra.mxu0 %v152
    %166 = vmatpush.bf16.msra.mxu0 %v151
    %167 = vmatpush.bf16.msra.mxu0 %v150
    %168 = vmatpush.bf16.msra.mxu0 %v149
    %169 = vmatpush.bf16.msra.mxu0 %v148
    %170 = vmatpush.bf16.msra.mxu0 %v147
    %171 = vmatmul.bf16.gmra.mxu0 %v111
    %v172 = vpop.f32.mrf.mxu0
    %v173 = vadd.f32 %v113, %v172
    %v174 = vpop.f32.mrf.mxu0
    %175 = vdwg.mxu0
    %v176 = vmax.f32 %v173, 0.0
    %v177 = vld [vmem:[#allocation4] sm:$0xf]
    %v178 = vld [vmem:[#allocation4 + $0x4] sm:$0xf]
    %v179 = vld [vmem:[#allocation4 + $0x8] sm:$0xf]
    %v180 = vld [vmem:[#allocation4 + $0xc] sm:$0xf]
    %v181 = vld [vmem:[#allocation4 + $0x10] sm:$0xf]
    %v182 = vld [vmem:[#allocation4 + $0x14] sm:$0xf]
    %v183 = vld [vmem:[#allocation4 + $0x18] sm:$0xf]
    %v184 = vld [vmem:[#allocation4 + $0x1c] sm:$0xf]
    %v185 = vld [vmem:[#allocation4 + $0x20] sm:$0xf]
    %v186 = vld [vmem:[#allocation4 + $0x24] sm:$0xf]
    %v187 = vld [vmem:[#allocation4 + $0x28] sm:$0xf]
    %v188 = vld [vmem:[#allocation4 + $0x2c] sm:$0xf]
    %v189 = vld [vmem:[#allocation4 + $0x30] sm:$0xf]
    %v190 = vld [vmem:[#allocation4 + $0x34] sm:$0xf]
    %v191 = vld [vmem:[#allocation4 + $0x38] sm:$0xf]
    %v192 = vld [vmem:[#allocation4 + $0x3c] sm:$0xf]
    %v193 = vld [vmem:[%s6] sm:$0x1]
    %v194 = vpack.c.bf16 %v176, %v176
    %v196 = vperm.slane %v193, 0
    %v214 = vunpack.c.l.b16 %v177
    %v215 = vunpack.c.l.b16 %v178
    %v216 = vunpack.c.l.b16 %v179
    %v217 = vunpack.c.l.b16 %v180
    %v218 = vunpack.c.l.b16 %v181
    %v219 = vunpack.c.l.b16 %v182
    %v220 = vunpack.c.l.b16 %v183
    %v221 = vunpack.c.l.b16 %v184
    %v222 = vunpack.c.l.b16 %v185
    %v223 = vunpack.c.l.b16 %v186
    %v224 = vunpack.c.l.b16 %v187
    %v225 = vunpack.c.l.b16 %v188
    %v226 = vunpack.c.l.b16 %v189
    %v227 = vunpack.c.l.b16 %v190
    %v228 = vunpack.c.l.b16 %v191
    %v229 = vunpack.c.l.b16 %v192
    %v230 = vpack.c.b16 %v215, %v214
    %v231 = vpack.c.b16 %v217, %v216
    %v232 = vpack.c.b16 %v219, %v218
    %v233 = vpack.c.b16 %v221, %v220
    %v234 = vpack.c.b16 %v223, %v222
    %v235 = vpack.c.b16 %v225, %v224
    %v236 = vpack.c.b16 %v227, %v226
    %v237 = vpack.c.b16 %v229, %v228
    %246 = vmatpush.bf16.msra.mxu0 %v237
    %247 = vmatpush.bf16.msra.mxu0 %v236
    %248 = vmatpush.bf16.msra.mxu0 %v235
    %249 = vmatpush.bf16.msra.mxu0 %v234
    %250 = vmatpush.bf16.msra.mxu0 %v233
    %251 = vmatpush.bf16.msra.mxu0 %v232
    %252 = vmatpush.bf16.msra.mxu0 %v231
    %253 = vmatpush.bf16.msra.mxu0 %v230
    %254 = vmatmul.bf16.gmra.mxu0 %v194
    %v255 = vpop.f32.mrf.mxu0
    %v256 = vadd.f32 %v196, %v255
    %v257 = vpop.f32.mrf.mxu0
    %258 = vdwg.mxu0
    %vm259 = vcmask 39936
    %260 = vst.msk [vmem:[%s7] sm:$0xff] %vm259, %v256
    // Predicated region
    $region38: #{mlp_forward.1} parent=1 // pred_check
      _
    $region39: #{mlp_forward.1} parent=1 // pred_check_branch
      %262 = sbr.rel (0) target = $region41
    $region40: #{mlp_forward.1} parent=1 // pred_region
      _
    $region41: #{mlp_forward.1} parent=1 // pred_fallthru
      _
    // Predicated region
    $region42: #{mlp_forward.1} parent=1 // pred_check
      _
    $region43: #{mlp_forward.1} parent=1 // pred_check_branch
      %264 = sbr.rel (0) target = $region45
    $region44: #{mlp_forward.1} parent=1 // pred_region
      _
    $region45: #{mlp_forward.1} parent=1 // pred_fallthru
      _
    %265 = vsyncpa [#allocation3], 1
    %266 = vsyncpa [#allocation5], 1

</llo_original>
